<compile_context>
chip_gen: v6e
topology: v6e:2x2x1
jax: 0.10.0
libtpu: 0.0.40
codegen_flags: <defaults>
</compile_context>

<pallas_src>
import math
import functools

import jax
import jax.numpy as jnp
from jax import lax
from jax.experimental import pallas as pl
from jax.experimental.pallas import tpu as pltpu


def make_positional_encoding(max_len: int, d_model: int) -> jnp.ndarray:
    """Deterministic sinusoidal table, identical to the PyTorch __init__."""
    position = jnp.arange(max_len, dtype=jnp.float32)[:, None]              # [L, 1]
    div_term = jnp.exp(
        jnp.arange(0, d_model, 2, dtype=jnp.float32)
        * (-math.log(10000.0) / d_model)
    )                                                                        # [D/2]
    pe = jnp.zeros((max_len, d_model), dtype=jnp.float32)
    pe = pe.at[:, 0::2].set(jnp.sin(position * div_term))
    pe = pe.at[:, 1::2].set(jnp.cos(position * div_term))
    # pe.unsqueeze(0).transpose(0, 1) in torch -> [max_len, 1, d_model]
    return pe[:, None, :]


def _pe_kernel(seed_ref, x_ref, pe_ref, o_ref, *,
               p: float, apply_dropout: bool,
               block_rows: int, batch: int, d_model: int):
    x = x_ref[...]                      # [TL, B, D]
    pe = pe_ref[...]                    # [TL, D] (lane-dense)
    y = x + pe[:, None, :]              # single broadcast over batch

    if apply_dropout:
        shape = y.shape
        # Global element counter (invariant to tiling) hashed with the seed.
        li = lax.broadcasted_iota(jnp.uint32, shape, 0)
        bi = lax.broadcasted_iota(jnp.uint32, shape, 1)
        di = lax.broadcasted_iota(jnp.uint32, shape, 2)
        row0 = (pl.program_id(0) * block_rows).astype(jnp.uint32)
        gidx = (li + row0) * jnp.uint32(batch * d_model) + bi * jnp.uint32(d_model) + di

        seed = seed_ref[0].astype(jnp.uint32)
        h = gidx + seed * jnp.uint32(2654435761)
        # murmur3 fmix32 finalizer (good avalanche on sequential counters)
        h = h ^ (h >> 16)
        h = h * jnp.uint32(0x7FEB352D)
        h = h ^ (h >> 15)
        h = h * jnp.uint32(0x846CA68B)
        h = h ^ (h >> 16)

        # Top 23 bits -> uniform float in [0, 1); keep with prob (1 - p).
        r = (h >> 9).astype(jnp.int32).astype(jnp.float32) * jnp.float32(1.0 / (1 << 23))
        keep = r >= jnp.float32(p)
        # Inverted dropout: keep -> scale by 1/(1-p); drop -> 0. f32 until store.
        y = jnp.where(keep, y * jnp.float32(1.0 / (1.0 - p)), jnp.zeros_like(y))

    o_ref[...] = y.astype(o_ref.dtype)


def _pick_block_rows(L: int, B: int, D: int, itemsize: int,
                     target_block_bytes: int = 2 * 1024 * 1024) -> int:
    """~2 MiB x-blocks: (2 inputs + 1 output) x 2 pipeline buffers stays far
    below the scoped-VMEM defaults on v5e/v6e and v7x's 64 MiB physical VMEM."""
    row_bytes = max(1, B * D * itemsize)
    tl = max(1, target_block_bytes // row_bytes)
    if tl >= L:
        return L
    # pe block is 2-D [block_rows, D]: its second-to-last dim must be a
    # multiple of 8 (or the full extent) per the (8, 128) rule.
    tl = max(8, (tl // 8) * 8)
    return min(tl, L)


def _pe_forward_pallas(x, pe2d, *, p: float, seed: int,
                       apply_dropout: bool, block_rows=None):
    """x: [L, B, D], pe2d: [L, D] (f32). Tiled Pallas add(+dropout) kernel."""
    L, B, D = x.shape
    itemsize = jnp.dtype(x.dtype).itemsize
    if block_rows is None:
        block_rows = _pick_block_rows(L, B, D, itemsize)
    if block_rows != L and block_rows % 8 != 0:
        raise ValueError("block_rows must be a multiple of 8 or equal to seq_len")

    grid = (pl.cdiv(L, block_rows),)
    seed_arr = jnp.asarray([seed], dtype=jnp.int32)

    kernel = functools.partial(
        _pe_kernel, p=float(p), apply_dropout=apply_dropout,
        block_rows=block_rows, batch=B, d_model=D)

    bytes_accessed = int((2 * x.size + pe2d.size) * itemsize)
    return pl.pallas_call(
        kernel,
        out_shape=jax.ShapeDtypeStruct((L, B, D), x.dtype),
        grid=grid,
        in_specs=[
            pl.BlockSpec(memory_space=pltpu.MemorySpace.SMEM),        # seed scalar
            pl.BlockSpec((block_rows, B, D), lambda i: (i, 0, 0)),    # x tile
            pl.BlockSpec((block_rows, D), lambda i: (i, 0)),          # pe tile (lane-dense)
        ],
        out_specs=pl.BlockSpec((block_rows, B, D), lambda i: (i, 0, 0)),
        compiler_params=pltpu.CompilerParams(
            dimension_semantics=("parallel",)),                       # shard L-tiles over v7x's 2 TCs
        cost_estimate=pl.CostEstimate(
            flops=3 * x.size, transcendentals=0, bytes_accessed=bytes_accessed),
    )(seed_arr, x, pe2d)


def positional_encoding_forward(x, pe_table, *, p=0.1, training=False, seed=0,
                                block_rows=None):
    """Forward of PositionalEncoding: dropout(x + pe[:L]).  x: [L, B, D]."""
    L = x.shape[0]
    pe2d = pe_table[:L, 0, :]                                         # [L, D]
    if (not training) or p <= 0.0:
        # Eval / no-dropout fast path: plain broadcast add that XLA fuses with
        # neighbouring ops (no pallas_call fusion barrier / extra HBM trip).
        return (x + pe2d[:, None, :]).astype(x.dtype)
    if p >= 1.0:
        return jnp.zeros_like(x)
    return _pe_forward_pallas(x, pe2d, p=p, seed=seed,
                              apply_dropout=True, block_rows=block_rows)


if __name__ == "__main__":
    # Small shapes consistent with the module: [seq_len, batch, d_model]
    seq_len, batch, d_model, max_len = 16, 2, 32, 64
    key = jax.random.PRNGKey(0)
    x = jax.random.normal(key, (seq_len, batch, d_model), dtype=jnp.float32)

    pe_table = make_positional_encoding(max_len, d_model)
    pe2d = pe_table[:seq_len, 0, :]
    ref = x + pe2d[:, None, :]

    # 1) Pallas path with dropout disabled (deterministic). block_rows=8 forces
    #    a 2-step grid so the tiled/pipelined path is exercised.
    out_add = _pe_forward_pallas(x, pe2d, p=0.0, seed=0,
                                 apply_dropout=False, block_rows=8)
    out_add = jax.block_until_ready(out_add)
    assert out_add.shape == (seq_len, batch, d_model)
    assert jnp.allclose(out_add, ref, atol=1e-6), "pallas add path mismatch"

    # 2) Training path: in-kernel dropout. Every element must be either 0 or
    #    (x + pe) / (1 - p).
    p = 0.1
    out_train = positional_encoding_forward(
        x, pe_table, p=p, training=True, seed=123, block_rows=8)
    out_train = jax.block_until_ready(out_train)
    scaled = ref / (1.0 - p)
    ok = jnp.isclose(out_train, scaled, rtol=1e-5, atol=1e-5) | (out_train == 0.0)
    assert bool(jnp.all(ok)), "train-mode dropout scaling mismatch"
    keep_frac = float(jnp.mean((out_train != 0.0).astype(jnp.float32)))
    assert 0.5 < keep_frac <= 1.0, f"implausible dropout keep fraction {keep_frac}"

    # 3) Eval fast path (plain JAX broadcast add): must match exactly.
    out_eval = positional_encoding_forward(x, pe_table, p=p, training=False)
    out_eval = jax.block_until_ready(out_eval)
    assert jnp.allclose(out_eval, ref, atol=1e-6), "eval-mode mismatch"

    print("KERNEL_OK")
</pallas_src>

<mosaic_0001>
module attributes {stable_mosaic.version = 11 : i64} {
  func.func @_pe_kernel(%arg0: i32, %arg1: memref<1xi32, #tpu.memory_space<smem>>, %arg2: memref<8x2x32xf32, #tpu.memory_space<vmem>>, %arg3: memref<8x32xf32, #tpu.memory_space<vmem>>, %arg4: memref<8x2x32xf32, #tpu.memory_space<vmem>>) attributes {dimension_semantics = [#tpu.dimension_semantics<parallel>], iteration_bounds = array<i64: 2>, scalar_prefetch = 0 : i64, scratch_operands = 0 : i64, tpu.core_type = #tpu.core_type<tc>, window_params = [{transform_indices = @transform_0, window_bounds = array<i64: 1>}, {transform_indices = @transform_1, window_bounds = array<i64: 8, 2, 32>}, {transform_indices = @transform_2, window_bounds = array<i64: 8, 32>}, {transform_indices = @transform_3, window_bounds = array<i64: 8, 2, 32>}]} {
    %c0 = arith.constant 0 : index
    %c0_0 = arith.constant 0 : index
    %c0_1 = arith.constant 0 : index
    %0 = vector.load %arg2[%c0, %c0_0, %c0_1] : memref<8x2x32xf32, #tpu.memory_space<vmem>>, vector<8x2x32xf32>
    %c0_2 = arith.constant 0 : index
    %c0_3 = arith.constant 0 : index
    %1 = vector.load %arg3[%c0_2, %c0_3] : memref<8x32xf32, #tpu.memory_space<vmem>>, vector<8x32xf32>
    %2 = vector.shape_cast %1 : vector<8x32xf32> to vector<8x1x32xf32>
    %3 = vector.broadcast %2 : vector<8x1x32xf32> to vector<8x2x32xf32>
    %4 = arith.addf %0, %3 : vector<8x2x32xf32>
    %c0_4 = arith.constant 0 : index
    %c0_5 = arith.constant 0 : index
    %c0_6 = arith.constant 0 : index
    %5 = vector.load %arg4[%c0_4, %c0_5, %c0_6] : memref<8x2x32xf32, #tpu.memory_space<vmem>>, vector<8x2x32xf32>
    tpu.vector_store %arg4[%c0_4, %c0_5, %c0_6], %4 {strides = array<i32>} : memref<8x2x32xf32, #tpu.memory_space<vmem>>, vector<8x2x32xf32>,
    return
  }
  func.func @transform_0(%arg0: i32) -> i32 {
    %c0_i32 = arith.constant 0 : i32
    %c0_i32_0 = arith.constant 0 : i32
    return %c0_i32 : i32
  }
  func.func @transform_1(%arg0: i32) -> (i32, i32, i32) {
    %c0_i32 = arith.constant 0 : i32
    %c0_i32_0 = arith.constant 0 : i32
    %c0_i32_1 = arith.constant 0 : i32
    return %arg0, %c0_i32, %c0_i32_0 : i32, i32, i32
  }
  func.func @transform_2(%arg0: i32) -> (i32, i32) {
    %c0_i32 = arith.constant 0 : i32
    %c0_i32_0 = arith.constant 0 : i32
    return %arg0, %c0_i32 : i32, i32
  }
  func.func @transform_3(%arg0: i32) -> (i32, i32, i32) {
    %c0_i32 = arith.constant 0 : i32
    %c0_i32_0 = arith.constant 0 : i32
    %c0_i32_1 = arith.constant 0 : i32
    return %arg0, %c0_i32, %c0_i32_0 : i32, i32, i32
  }
}

</mosaic_0001>

<llo_original>
// kernel: tpu_custom_call.1
$region0: #{tpu_custom_call.1}
  #allocation0 [shape = 'u32[]', space=smem, size = 0x4, offset = 0x4, fixed_abs, tag = 'smem constant byte address 0x4 - core index']
  #allocation1 [shape = 'u32[144,128]{1,0:T(1,128)}', space=vmem, size = 0x12000, scoped, tag = 'internal scratch']
  #allocation2 [shape = 's32[1]{0:T(128)S(6)}', space=smem, size = 0x200, scoped, tag = 'scoped memory for tpu_custom_call.1']
  %s0 = inlined_call_operand.<no memory space> [shape: s32[1], index: 0, kind: input, shape index: {}]
  %s1 = inlined_call_operand.hbm [shape: f32[16,2,32], index: 1, kind: input, shape index: {}]
  %s2 = inlined_call_operand.hbm [shape: f32[16,32], index: 2, kind: input, shape index: {}]
  %s3 = inlined_call_operand.hbm [shape: f32[16,2,32], index: 3, kind: output, shape index: {}]
  %s4 = sld [smem:[#allocation0]]
  $region53: #{tpu_custom_call.1} parent=0
    _
  %s6 = ssub.s32 1, %s4
  %s7 = scalar_select 0, %s6, %s4
  %8 = sst [smem:[#allocation2]] %s0
  $region1: #{tpu_custom_call.1} parent=0
    #allocation3 [shape = 'u8[16384]{0}', space=vmem, size = 0x4000, scoped, tag = 'input window, operand 1']
    #allocation4 [shape = 's32[2]{0}', space=sflag, size = 0x8, scoped, tag = 'scoped memory for tpu_custom_call.1']
    #allocation5 [shape = 's32[2]{0}', space=sflag, size = 0x8, scoped, tag = 'scoped memory for tpu_custom_call.1']
    #allocation6 [shape = 'u8[8192]{0}', space=vmem, size = 0x2000, scoped, tag = 'input window, operand 2']
    #allocation7 [shape = 's32[2]{0}', space=sflag, size = 0x8, scoped, tag = 'scoped memory for tpu_custom_call.1']
    #allocation8 [shape = 'u8[16384]{0}', space=vmem, size = 0x4000, scoped, tag = 'output window, operand 0']
    %9 = vsyncpa [#allocation4], 0
    %s10 = scalar_lea.sflag [#allocation4], 1
    %11 = vsyncpa %s10, 0
    %12 = vsyncpa [#allocation7], 0
    %s13 = scalar_lea.sflag [#allocation7], 1
    %14 = vsyncpa %s13, 0
    %15 = vsyncpa [#allocation5], 0
    %s16 = scalar_lea.sflag [#allocation5], 1
    %17 = vsyncpa %s16, 0
    loop: start=0, step=1, limit=4
    $region2: #{tpu_custom_call.1} parent=1 // loop_pre_header
      _
    $region3: #{tpu_custom_call.1} parent=1 // loop_header
      %s19 = sphi 0, %s23
      %p20 = scmp.ge.s32.totalorder %s19, 4
      %s27 = sphi 0, %s27
      %s29 = sphi 0, %s27
      %s30 = sphi 0, %s29
      %s44 = sphi 0, %s30
      %s50 = sphi 0, %s52
      %s53 = sphi 0, %s50
      %s54 = sphi 0, %s53
      %s70 = sphi 0, %s54
      %s76 = sphi 0, %s78
      %s79 = sphi 0, %s76
      %s80 = sphi 0, %s79
      %s96 = sphi 0, %s80
      %s102 = sphi 0, %s104
      %s105 = sphi 0, %s102
      %s106 = sphi 0, %s105
      %s122 = sphi 0, %s106
    $region4: #{tpu_custom_call.1} parent=1 // loop_header_branch
      %22 = sbr.rel (%p20) target = $region8
    $region5: #{tpu_custom_call.1} parent=1 // loop_body
      %s24 = ssub.s32 %s19, 1
      %s25 = ssub.s32 %s19, 2
      %s26 = sadd.s32 %s19, 1
      %s28 = sadd.s32 %s27, 1
      %p31 = scmp.eq.s32.totalorder %s19, 1
      %p32 = scmp.ne.s32.totalorder %s27, %s29
      %p33 = scmp.eq.s32.totalorder %s19, 0
      %p34 = por %p32, %p33
      %p35 = scmp.ne.s32.totalorder %s27, %s29
      %p36 = scmp.eq.s32.totalorder %s24, 1
      %p37 = por %p35, %p36
      %p38 = scmp.ne.s32.totalorder %s29, %s30
      %p39 = scmp.eq.s32.totalorder %s24, 0
      %p40 = por %p38, %p39
      %p41 = scmp.ne.s32.totalorder %s29, %s30
      %p42 = scmp.eq.s32.totalorder %s25, 1
      %p43 = por %p41, %p42
      %p45 = scmp.ne.s32.totalorder %s30, %s44
      %p46 = scmp.eq.s32.totalorder %s25, 0
      %p47 = por %p45, %p46
      %s48 = ssub.s32 %s19, %s26
      %p49 = scmp.eq.s32.totalorder %s48, 0
      %s51 = sadd.s32 %s50, 1
      %s52 = scalar_select %p49, %s50, %s51
      %p55 = pneg %p49
      %p56 = scmp.eq.s32.totalorder %s19, 1
      %p57 = por %p55, %p56
      %p58 = scmp.ne.s32.totalorder %s50, %s53
      %p59 = scmp.eq.s32.totalorder %s19, 0
      %p60 = por %p58, %p59
      %p61 = scmp.ne.s32.totalorder %s50, %s53
      %p62 = scmp.eq.s32.totalorder %s24, 1
      %p63 = por %p61, %p62
      %p64 = scmp.ne.s32.totalorder %s53, %s54
      %p65 = scmp.eq.s32.totalorder %s24, 0
      %p66 = por %p64, %p65
      %p67 = scmp.ne.s32.totalorder %s53, %s54
      %p68 = scmp.eq.s32.totalorder %s25, 1
      %p69 = por %p67, %p68
      %p71 = scmp.ne.s32.totalorder %s54, %s70
      %p72 = scmp.eq.s32.totalorder %s25, 0
      %p73 = por %p71, %p72
      %s74 = ssub.s32 %s19, %s26
      %p75 = scmp.eq.s32.totalorder %s74, 0
      %s77 = sadd.s32 %s76, 1
      %s78 = scalar_select %p75, %s76, %s77
      %p81 = pneg %p75
      %p82 = scmp.eq.s32.totalorder %s19, 1
      %p83 = por %p81, %p82
      %p84 = scmp.ne.s32.totalorder %s76, %s79
      %p85 = scmp.eq.s32.totalorder %s19, 0
      %p86 = por %p84, %p85
      %p87 = scmp.ne.s32.totalorder %s76, %s79
      %p88 = scmp.eq.s32.totalorder %s24, 1
      %p89 = por %p87, %p88
      %p90 = scmp.ne.s32.totalorder %s79, %s80
      %p91 = scmp.eq.s32.totalorder %s24, 0
      %p92 = por %p90, %p91
      %p93 = scmp.ne.s32.totalorder %s79, %s80
      %p94 = scmp.eq.s32.totalorder %s25, 1
      %p95 = por %p93, %p94
      %p97 = scmp.ne.s32.totalorder %s80, %s96
      %p98 = scmp.eq.s32.totalorder %s25, 0
      %p99 = por %p97, %p98
      %s100 = ssub.s32 %s19, %s26
      %p101 = scmp.eq.s32.totalorder %s100, 0
      %s103 = sadd.s32 %s102, 1
      %s104 = scalar_select %p101, %s102, %s103
      %p107 = pneg %p101
      %p108 = scmp.eq.s32.totalorder %s19, 1
      %p109 = por %p107, %p108
      %p110 = scmp.ne.s32.totalorder %s102, %s105
      %p111 = scmp.eq.s32.totalorder %s19, 0
      %p112 = por %p110, %p111
      %p113 = scmp.ne.s32.totalorder %s102, %s105
      %p114 = scmp.eq.s32.totalorder %s24, 1
      %p115 = por %p113, %p114
      %p116 = scmp.ne.s32.totalorder %s105, %s106
      %p117 = scmp.eq.s32.totalorder %s24, 0
      %p118 = por %p116, %p117
      %p119 = scmp.ne.s32.totalorder %s105, %s106
      %p120 = scmp.eq.s32.totalorder %s25, 1
      %p121 = por %p119, %p120
      %p123 = scmp.ne.s32.totalorder %s106, %s122
      %p124 = scmp.eq.s32.totalorder %s25, 0
      %p125 = por %p123, %p124
      %p126 = scmp.le.s32.totalorder 1, %s19
      %p127 = scmp.lt.s32.totalorder %s19, 3
      %p128 = pnand %p126, %p127
      %p129 = pneg %p128
      // Predicated region
      $region9: #{tpu_custom_call.1} parent=5 // pred_check
        _
      $region10: #{tpu_custom_call.1} parent=5 // pred_check_branch
        %131 = sbr.rel (%p128) target = $region12
      $region11: #{tpu_custom_call.1} parent=5 // pred_region
        %s132 = ssub.s32 %s19, 1
        // Predicated region
        $region13: #{tpu_custom_call.1} parent=11 // pred_check
          %p133 = pneg %p40
        $region14: #{tpu_custom_call.1} parent=11 // pred_check_branch
          %135 = sbr.rel (%p133) target = $region16
        $region15: #{tpu_custom_call.1} parent=11 // pred_region
          _
        $region16: #{tpu_custom_call.1} parent=11 // pred_fallthru
          _
      $region12: #{tpu_custom_call.1} parent=5 // pred_fallthru
        _
      %p136 = scmp.lt.s32.totalorder %s19, 2
      // Predicated region
      $region17: #{tpu_custom_call.1} parent=5 // pred_check
        %p137 = pneg %p136
      $region18: #{tpu_custom_call.1} parent=5 // pred_check_branch
        %139 = sbr.rel (%p137) target = $region20
      $region19: #{tpu_custom_call.1} parent=5 // pred_region
        // Predicated region
        $region21: #{tpu_custom_call.1} parent=19 // pred_check
          %p140 = pneg %p60
        $region22: #{tpu_custom_call.1} parent=19 // pred_check_branch
          %142 = sbr.rel (%p140) target = $region24
        $region23: #{tpu_custom_call.1} parent=19 // pred_region
          %s143 = sand.u32 %s50, 1
          %s144 = scalar_lea.sflag [#allocation4], %s143
          %s145 = sand.u32 %s50, 1
          %s146 = smul.addr %s145, 16
          %s147 = scalar_lea.vmem [#allocation3], %s146
          %s148 = smul.u32 8, %s19
          %s150 = ssub.s32 256, 256
          %151 = vsyncadd %s144, %s150
          %s152 = smul.addr %s148, 32
          %s153 = scalar_lea.hbm %s1, %s152
          %s154 = sshll.u32 %s147, 4
          %s155 = int_to_ptr.vmem [resolvable:$true] %s154
          %160 = dma.hbm_to_vmem [thread:$0]  %s153, 256, %s155, %s144, 32, 32, 2
        $region24: #{tpu_custom_call.1} parent=19 // pred_fallthru
          _
        // Predicated region
        $region25: #{tpu_custom_call.1} parent=19 // pred_check
          %p161 = pneg %p86
        $region26: #{tpu_custom_call.1} parent=19 // pred_check_branch
          %163 = sbr.rel (%p161) target = $region28
        $region27: #{tpu_custom_call.1} parent=19 // pred_region
          %s164 = sand.u32 %s76, 1
          %s165 = scalar_lea.sflag [#allocation7], %s164
          %s166 = sand.u32 %s76, 1
          %s167 = smul.addr %s166, 8
          %s168 = scalar_lea.vmem [#allocation6], %s167
          %s170 = ssub.s32 128, 128
          %171 = vsyncadd %s165, %s170
          %s172 = smul.addr %s19, 128
          %s173 = scalar_lea.hbm %s2, %s172
          %s175 = sshll.u32 %s168, 4
          %s176 = int_to_ptr.vmem [resolvable:$true] %s175
          %178 = dma.hbm_to_vmem [thread:$0]  %s173, 128, %s176, %s165
        $region28: #{tpu_custom_call.1} parent=19 // pred_fallthru
          _
      $region20: #{tpu_custom_call.1} parent=5 // pred_fallthru
        _
      %p179 = scmp.le.s32.totalorder 1, %s19
      %p180 = scmp.lt.s32.totalorder %s19, 3
      %p181 = pnand %p179, %p180
      %p182 = pneg %p181
      // Predicated region
      $region29: #{tpu_custom_call.1} parent=5 // pred_check
        _
      $region30: #{tpu_custom_call.1} parent=5 // pred_check_branch
        %184 = sbr.rel (%p181) target = $region32
      $region31: #{tpu_custom_call.1} parent=5 // pred_region
        %s185 = ssub.s32 %s19, 1
        %s186 = sand.u32 %s53, 1
        %s187 = scalar_lea.sflag [#allocation4], %s186
        %s188 = sand.u32 %s53, 1
        %s189 = smul.addr %s188, 16
        %s190 = scalar_lea.vmem [#allocation3], %s189
        // Predicated region
        $region33: #{tpu_custom_call.1} parent=31 // pred_check
          %p191 = pneg %p66
        $region34: #{tpu_custom_call.1} parent=31 // pred_check_branch
          %193 = sbr.rel (%p191) target = $region36
        $region35: #{tpu_custom_call.1} parent=31 // pred_region
          %194 = dma.done %s187, 256
        $region36: #{tpu_custom_call.1} parent=31 // pred_fallthru
          _
        %s195 = sand.u32 %s79, 1
        %s196 = scalar_lea.sflag [#allocation7], %s195
        %s197 = sand.u32 %s79, 1
        %s198 = smul.addr %s197, 8
        %s199 = scalar_lea.vmem [#allocation6], %s198
        // Predicated region
        $region37: #{tpu_custom_call.1} parent=31 // pred_check
          %p200 = pneg %p92
        $region38: #{tpu_custom_call.1} parent=31 // pred_check_branch
          %202 = sbr.rel (%p200) target = $region40
        $region39: #{tpu_custom_call.1} parent=31 // pred_region
          %203 = dma.done %s196, 128
        $region40: #{tpu_custom_call.1} parent=31 // pred_fallthru
          _
        %p204 = pneg %p40
        %p205 = pneg %p37
        %s206 = sand.u32 %s53, 1
        %s207 = scalar_lea.sflag [#allocation4], %s206
        %s208 = sand.u32 %s53, 1
        %s209 = smul.addr %s208, 16
        %s210 = scalar_lea.vmem [#allocation3], %s209
        %p211 = pneg %p66
        %p212 = pneg %p63
        %s213 = sand.u32 %s79, 1
        %s214 = scalar_lea.sflag [#allocation7], %s213
        %s215 = sand.u32 %s79, 1
        %s216 = smul.addr %s215, 8
        %s217 = scalar_lea.vmem [#allocation6], %s216
        %p218 = pneg %p92
        %p219 = pneg %p89
        %p220 = pneg %p118
        %p221 = pneg %p115
        %s222 = sand.u32 %s105, 1
        %s223 = scalar_lea.sflag [#allocation5], %s222
        %s224 = sand.u32 %s105, 1
        %s225 = smul.addr %s224, 16
        %s226 = scalar_lea.vmem [#allocation8], %s225
        %s227 = smul.u32 8, %s24
        %s228 = smul.u32 8, %s24
        %v229 = vld [vmem:[%s190] sm:$0x3]
        %v230 = vld [vmem:[%s190 + $0x2] sm:$0x3]
        %v231 = vld [vmem:[%s190 + $0x4] sm:$0x3]
        %v232 = vld [vmem:[%s190 + $0x6] sm:$0x3]
        %v233 = vld [vmem:[%s190 + $0x8] sm:$0x3]
        %v234 = vld [vmem:[%s190 + $0xa] sm:$0x3]
        %v235 = vld [vmem:[%s190 + $0xc] sm:$0x3]
        %v236 = vld [vmem:[%s190 + $0xe] sm:$0x3]
        %v237 = vld [vmem:[%s199] sm:$0xff]
        %v239 = vcombine.high %v237, %v237
        %v241 = vunpack.c.l.s4 1966171168
        %v242 = vunpack.c.0.s8 %v241
        %v243 = vlaneseq
        %v244 = vshrl.u32 %v243, 7
        %v245 = vsub.s32 %v242, %v244
        %v246 = vrot.slane %v237, %v245
        %v248 = vunpack.c.l.s4 1966171168
        %v249 = vunpack.c.0.s8 %v248
        %v250 = vlaneseq
        %v251 = vshrl.u32 %v250, 7
        %v252 = vsub.s32 %v249, %v251
        %v253 = vrot.slane %v239, %v252
        %v254 = vcombine.high %v246, %v246
        %v255 = vcombine.high %v253, %v253
        %v257 = vunpack.c.l.s4 1966171168
        %v258 = vunpack.c.0.s8 %v257
        %v259 = vlaneseq
        %v260 = vshrl.u32 %v259, 7
        %v261 = vsub.s32 %v258, %v260
        %v262 = vrot.slane %v246, %v261
        %v264 = vunpack.c.l.s4 1966171168
        %v265 = vunpack.c.0.s8 %v264
        %v266 = vlaneseq
        %v267 = vshrl.u32 %v266, 7
        %v268 = vsub.s32 %v265, %v267
        %v269 = vrot.slane %v253, %v268
        %v271 = vunpack.c.l.s4 1966171168
        %v272 = vunpack.c.0.s8 %v271
        %v273 = vlaneseq
        %v274 = vshrl.u32 %v273, 7
        %v275 = vsub.s32 %v272, %v274
        %v276 = vrot.slane %v254, %v275
        %v278 = vunpack.c.l.s4 1966171168
        %v279 = vunpack.c.0.s8 %v278
        %v280 = vlaneseq
        %v281 = vshrl.u32 %v280, 7
        %v282 = vsub.s32 %v279, %v281
        %v283 = vrot.slane %v255, %v282
        %v284 = vcombine.high %v262, %v262
        %v285 = vcombine.high %v269, %v269
        %v286 = vcombine.high %v276, %v276
        %v287 = vcombine.high %v283, %v283
        %v288 = vlaneseq
        %v289 = vshrl.u32 %v288, 7
        %v290 = vsub.s32 0, %v289
        %v291 = vrot.slane %v262, %v290
        %v292 = vlaneseq
        %v293 = vshrl.u32 %v292, 7
        %v294 = vsub.s32 0, %v293
        %v295 = vrot.slane %v276, %v294
        %v296 = vlaneseq
        %v297 = vshrl.u32 %v296, 7
        %v298 = vsub.s32 0, %v297
        %v299 = vrot.slane %v284, %v298
        %v300 = vlaneseq
        %v301 = vshrl.u32 %v300, 7
        %v302 = vsub.s32 0, %v301
        %v303 = vrot.slane %v286, %v302
        %v304 = vlaneseq
        %v305 = vshrl.u32 %v304, 7
        %v306 = vsub.s32 0, %v305
        %v307 = vrot.slane %v269, %v306
        %v308 = vlaneseq
        %v309 = vshrl.u32 %v308, 7
        %v310 = vsub.s32 0, %v309
        %v311 = vrot.slane %v283, %v310
        %v312 = vlaneseq
        %v313 = vshrl.u32 %v312, 7
        %v314 = vsub.s32 0, %v313
        %v315 = vrot.slane %v285, %v314
        %v316 = vlaneseq
        %v317 = vshrl.u32 %v316, 7
        %v318 = vsub.s32 0, %v317
        %v319 = vrot.slane %v287, %v318
        %v328 = vadd.f32 %v229, %v291
        %v329 = vadd.f32 %v230, %v295
        %v330 = vadd.f32 %v231, %v299
        %v331 = vadd.f32 %v232, %v303
        %v332 = vadd.f32 %v233, %v307
        %v333 = vadd.f32 %v234, %v311
        %v334 = vadd.f32 %v235, %v315
        %v335 = vadd.f32 %v236, %v319
        %vm336 = vcmask 254976
        %337 = vst.msk [vmem:[%s226] sm:$0x3] %vm336, %v328
        %338 = vst.msk [vmem:[%s226 + $0x2] sm:$0x3] %vm336, %v329
        %339 = vst.msk [vmem:[%s226 + $0x4] sm:$0x3] %vm336, %v330
        %340 = vst.msk [vmem:[%s226 + $0x6] sm:$0x3] %vm336, %v331
        %341 = vst.msk [vmem:[%s226 + $0x8] sm:$0x3] %vm336, %v332
        %342 = vst.msk [vmem:[%s226 + $0xa] sm:$0x3] %vm336, %v333
        %343 = vst.msk [vmem:[%s226 + $0xc] sm:$0x3] %vm336, %v334
        %344 = vst.msk [vmem:[%s226 + $0xe] sm:$0x3] %vm336, %v335
        %s345 = sand.u32 %s105, 1
        %s346 = scalar_lea.sflag [#allocation5], %s345
        %s347 = sand.u32 %s105, 1
        %s348 = smul.addr %s347, 16
        %s349 = scalar_lea.vmem [#allocation8], %s348
        // Predicated region
        $region41: #{tpu_custom_call.1} parent=31 // pred_check
          %p350 = pneg %p115
        $region42: #{tpu_custom_call.1} parent=31 // pred_check_branch
          %352 = sbr.rel (%p350) target = $region44
        $region43: #{tpu_custom_call.1} parent=31 // pred_region
          %s353 = smul.u32 8, %s24
          %s355 = ssub.s32 256, 256
          %356 = vsyncadd %s346, %s355
          %s357 = smul.addr %s353, 32
          %s358 = scalar_lea.hbm %s3, %s357
          %s359 = sshll.u32 %s349, 4
          %s360 = int_to_ptr.vmem [resolvable:$true] %s359
          %365 = dma.vmem_to_hbm [thread:$0]  %s360, 256, %s358, %s346, 32, 32, 2
        $region44: #{tpu_custom_call.1} parent=31 // pred_fallthru
          _
      $region32: #{tpu_custom_call.1} parent=5 // pred_fallthru
        _
      %p366 = scmp.le.s32.totalorder 2, %s19
      // Predicated region
      $region45: #{tpu_custom_call.1} parent=5 // pred_check
        %p367 = pneg %p366
      $region46: #{tpu_custom_call.1} parent=5 // pred_check_branch
        %369 = sbr.rel (%p367) target = $region48
      $region47: #{tpu_custom_call.1} parent=5 // pred_region
        %s370 = ssub.s32 %s19, 2
        // Predicated region
        $region49: #{tpu_custom_call.1} parent=47 // pred_check
          %p371 = pneg %p121
        $region50: #{tpu_custom_call.1} parent=47 // pred_check_branch
          %373 = sbr.rel (%p371) target = $region52
        $region51: #{tpu_custom_call.1} parent=47 // pred_region
          %s374 = sand.u32 %s106, 1
          %s375 = scalar_lea.sflag [#allocation5], %s374
          %s376 = sand.u32 %s106, 1
          %s377 = smul.addr %s376, 16
          %s378 = scalar_lea.vmem [#allocation8], %s377
          %379 = dma.done %s375, 256
        $region52: #{tpu_custom_call.1} parent=47 // pred_fallthru
          _
      $region48: #{tpu_custom_call.1} parent=5 // pred_fallthru
        _
    $region6: #{tpu_custom_call.1} parent=1 // loop_footer
      %s23 = sadd.s32 1, %s19
    $region7: #{tpu_custom_call.1} parent=1 // loop_footer_branch
      %18 = sbr.rel target = $region3
    $region8: #{tpu_custom_call.1} parent=1 // loop_exit
      _
    %380 = vsyncpa [#allocation4], 1
    %s381 = scalar_lea.sflag [#allocation4], 1
    %382 = vsyncpa %s381, 1
    %383 = vsyncpa [#allocation7], 1
    %s384 = scalar_lea.sflag [#allocation7], 1
    %385 = vsyncpa %s384, 1
    %386 = vsyncpa [#allocation5], 1
    %s387 = scalar_lea.sflag [#allocation5], 1
    %388 = vsyncpa %s387, 1

</llo_original>
